<compile_context>
chip_gen: v7x
topology: tpu7x:2x2x1
jax: 0.10.0
libtpu: 0.0.40
codegen_flags: <defaults>
</compile_context>

<pallas_src>
from functools import partial

import numpy as np
import jax
import jax.numpy as jnp
from jax import lax
from jax.experimental import pallas as pl
from jax.experimental.pallas import tpu as pltpu


def _round_up(x, m):
    return (x + m - 1) // m * m


# ---------------------------------------------------------------------------
# Kernel 1: fused node-state / Wh matmul (bf16 operands, f32 accumulation)
# ---------------------------------------------------------------------------
def _matmul_kernel(x_ref, w_ref, o_ref):
    o_ref[...] = jnp.dot(
        x_ref[...], w_ref[...], preferred_element_type=jnp.float32
    ).astype(o_ref.dtype)


def matmul_rows(x, w, out_dtype=jnp.float32, tm=512):
    """[M, K] @ [K, N] with optional row tiling (tm rows per grid step)."""
    M, K = x.shape
    N = w.shape[1]
    if M <= tm:
        return pl.pallas_call(
            _matmul_kernel,
            out_shape=jax.ShapeDtypeStruct((M, N), out_dtype),
        )(x, w)
    Mp = _round_up(M, tm)
    if Mp != M:
        x = jnp.pad(x, ((0, Mp - M), (0, 0)))
    out = pl.pallas_call(
        _matmul_kernel,
        out_shape=jax.ShapeDtypeStruct((Mp, N), out_dtype),
        grid=(Mp // tm,),
        in_specs=[pl.BlockSpec((tm, K), lambda i: (i, 0)),
                  pl.BlockSpec((K, N), lambda i: (0, 0))],
        out_specs=pl.BlockSpec((tm, N), lambda i: (i, 0)),
        compiler_params=pltpu.CompilerParams(dimension_semantics=("parallel",)),
    )(x, w)
    return out[:M]


# ---------------------------------------------------------------------------
# Kernel 2: GAT attention + aggregation + ELU + fused output heads.
# One graph per grid step; adjacency rebuilt in-kernel from (f_num, s_num)
# scalar prefetch; logits emitted transposed (2, Nmax) for lane-dense stores.
# ---------------------------------------------------------------------------
def _gat_attn_kernel(fnum_ref, snum_ref, wh_ref, a_ref, wout_ref, bcol_ref,
                     o_ref, *, heads, dh, Nmax):
    g = pl.program_id(0)
    fn = fnum_ref[g]                                  # SMEM scalar reads
    sn = snum_ref[g]
    fs = fn + sn
    n = fs + 2

    wh = wh_ref[0]                                    # [Nmax, Hp]   bf16
    w_out = wout_ref[...]                             # [H, 2]       f32
    # all heads' alpha_src / alpha_dst coefficients in one MXU op
    alpha = jnp.dot(wh, a_ref[...],
                    preferred_element_type=jnp.float32)  # [Nmax, 2*heads] f32

    # adjacency masks from 1-D iotas; full [Nmax, Nmax] tensors only appear in
    # the cheap boolean AND/OR combines.
    r = lax.broadcasted_iota(jnp.int32, (Nmax, 1), 0)
    c = lax.broadcasted_iota(jnp.int32, (1, Nmax), 1)
    feat_r, feat_c = r < fn, c < fn
    sent_r = (r >= fn) & (r < fs)
    sent_c = (c >= fn) & (c < fs)
    fs_r, fs_c = r < fs, c < fs
    ui_r = (r >= fs) & (r < n)
    ui_c = (c >= fs) & (c < n)
    mask = ((feat_r & sent_c) | (sent_r & feat_c) | (ui_r & fs_c)
            | (fs_r & ui_c) | ((r == c) & (r < n)))   # [Nmax, Nmax] bool

    neg_big = jnp.float32(-1e9)
    logits_t = jnp.zeros((2, Nmax), jnp.float32)
    for h in range(heads):                            # small static unroll (4)
        a_s = alpha[:, h:h + 1]                       # [Nmax, 1] source term
        a_d = alpha[:, heads + h:heads + h + 1]       # [Nmax, 1] target term
        e = a_d + jnp.transpose(a_s)                  # [Nmax, Nmax] f32
        e = jnp.maximum(e, 0.2 * e)                   # LeakyReLU(0.2), one max
        e = jnp.where(mask, e, neg_big)               # sole masking mechanism
        p = jnp.exp(e - jnp.max(e, axis=1, keepdims=True))  # masked -> exactly 0
        recip = pl.reciprocal(                        # EUP, not a VALU divide
            jnp.maximum(jnp.sum(p, axis=1, keepdims=True), 1e-9), approx=True)
        # normalization folded into the [Nmax, dh] epilogue, not the Nmax^2 map
        head_out = jnp.dot(p.astype(wh.dtype), wh[:, h * dh:(h + 1) * dh],
                           preferred_element_type=jnp.float32) * recip
        hidden_h = jax.nn.elu(head_out)               # [Nmax, dh] f32
        # fused per-head slice of the sentence/feature output heads, produced
        # directly in transposed [2, Nmax] (lane-dense) layout.
        logits_t = logits_t + lax.dot_general(
            w_out[h * dh:(h + 1) * dh, :], hidden_h,
            (((0,), (1,)), ((), ())), preferred_element_type=jnp.float32)

    o_ref[0] = (logits_t + bcol_ref[...]).astype(o_ref.dtype)


def gat_attention(f_num, s_num, wh_dense, a_alpha, w_out, b_col, *, heads):
    B_pad, Nmax, Hp = wh_dense.shape
    H = w_out.shape[0]
    dh = H // heads
    kernel = partial(_gat_attn_kernel, heads=heads, dh=dh, Nmax=Nmax)
    grid_spec = pltpu.PrefetchScalarGridSpec(
        num_scalar_prefetch=2,                        # f_num, s_num -> SMEM
        grid=(B_pad,),                                # one graph per step
        in_specs=[
            pl.BlockSpec((1, Nmax, Hp), lambda g, fn, sn: (g, 0, 0)),
            pl.BlockSpec((Hp, 2 * heads), lambda g, fn, sn: (0, 0)),
            pl.BlockSpec((H, 2), lambda g, fn, sn: (0, 0)),
            pl.BlockSpec((2, 1), lambda g, fn, sn: (0, 0)),
        ],
        out_specs=pl.BlockSpec((1, 2, Nmax), lambda g, fn, sn: (g, 0, 0)),
    )
    return pl.pallas_call(
        kernel,
        out_shape=jax.ShapeDtypeStruct((B_pad, 2, Nmax), jnp.float32),
        grid_spec=grid_spec,
        compiler_params=pltpu.CompilerParams(
            dimension_semantics=("parallel",),        # independent graphs
            vmem_limit_bytes=32 * 1024 * 1024),       # > v5e's 16 MiB default
    )(f_num, s_num, wh_dense, a_alpha, w_out, b_col)


# ---------------------------------------------------------------------------
# Parameter plumbing
# ---------------------------------------------------------------------------
def _build_alpha_weight(a_src, a_dst):
    """Block-diagonal [H, 2*heads]: col h = a_src[h] at rows h*dh:(h+1)*dh,
    col heads+h = a_dst[h]."""
    heads, dh = a_src.shape
    H = heads * dh
    eye = jnp.eye(heads, dtype=a_src.dtype)
    blk_src = (a_src[:, :, None] * eye[:, None, :]).reshape(H, heads)
    blk_dst = (a_dst[:, :, None] * eye[:, None, :]).reshape(H, heads)
    return jnp.concatenate([blk_src, blk_dst], axis=1)


# ---------------------------------------------------------------------------
# GraphX forward (non-conditioned path: sentence / feature logits)
# ---------------------------------------------------------------------------
def graphx_forward(params, batch):
    heads = params["head_num"]
    H = params["Wgat"].shape[0]
    Hp = max(128, _round_up(H, 128))          # lane-dense hidden width

    f_num = np.asarray(batch["f_num"], dtype=np.int64)
    s_num = np.asarray(batch["s_num"], dtype=np.int64)
    B = int(f_num.shape[0])
    Nf, Ns = int(f_num.sum()), int(s_num.sum())

    # >= 2 grid steps so the "parallel" batch axis shards across both v7x TCs
    B_pad = max(2, _round_up(B, 2))
    Nmax = int((f_num + s_num + 2).max())
    Nmax_p = max(128, _round_up(Nmax, 128))   # lane-dense dense-batch width

    # ---- host side: integer index bookkeeping only (no dense f32 tensors) ---
    pad_row = Nf + Ns + 2 * B                 # index of the all-zero source row
    gather_idx = np.full((B_pad, Nmax_p), pad_row, dtype=np.int32)
    f_off = np.concatenate([[0], np.cumsum(f_num)])
    s_off = np.concatenate([[0], np.cumsum(s_num)])
    feat_pos, sent_pos = [np.zeros(0, np.int64)], [np.zeros(0, np.int64)]
    for b in range(B):
        fn, sn = int(f_num[b]), int(s_num[b])
        gather_idx[b, :fn] = f_off[b] + np.arange(fn)
        gather_idx[b, fn:fn + sn] = Nf + s_off[b] + np.arange(sn)
        gather_idx[b, fn + sn] = Nf + Ns + b           # user node
        gather_idx[b, fn + sn + 1] = Nf + Ns + B + b   # item node
        feat_pos.append(b * Nmax_p + np.arange(fn))
        sent_pos.append(b * Nmax_p + fn + np.arange(sn))
    feat_pos = jnp.asarray(np.concatenate(feat_pos).astype(np.int32))
    sent_pos = jnp.asarray(np.concatenate(sent_pos).astype(np.int32))
    gather_idx = jnp.asarray(gather_idx.reshape(-1))
    f_num_pad = jnp.asarray(np.pad(f_num, (0, B_pad - B)).astype(np.int32))
    s_num_pad = jnp.asarray(np.pad(s_num, (0, B_pad - B)).astype(np.int32))

    # ---- device side: embedding lookups + dense-batch gather ----------------
    emb_f = params["feat_emb"][batch["fid"]]
    emb_s = params["sent_emb"][batch["sid"]]
    emb_u = params["user_emb"][batch["userid"]]
    emb_i = params["item_emb"][batch["itemid"]]
    Ef, Es = emb_f.shape[1], emb_s.shape[1]
    Eu, Ei = emb_u.shape[1], emb_i.shape[1]
    Ecat = Ef + Es + Eu + Ei
    rows = jnp.concatenate([
        jnp.pad(emb_f, ((0, 0), (0, Ecat - Ef))),
        jnp.pad(emb_s, ((0, 0), (Ef, Eu + Ei))),
        jnp.pad(emb_u, ((0, 0), (Ef + Es, Ei))),
        jnp.pad(emb_i, ((0, 0), (Ef + Es + Eu, 0))),
        jnp.zeros((1, Ecat), jnp.float32),            # padding-slot source row
    ], axis=0)
    x_in = jnp.take(rows, gather_idx, axis=0)          # [B_pad*Nmax_p, Ecat]

    # Fold the 4 bias-free state projections and the GAT input transform into
    # one weight; pad the output dim to 128 lanes so the wh stores/loads and
    # the alpha matmul K-dim are lane-dense.
    W_nodes = jnp.concatenate(
        [params["Wf"], params["Ws"], params["Wu"], params["Wi"]], axis=0)
    W_comb = jnp.dot(W_nodes, params["Wgat"])           # [Ecat, H]
    W_comb = jnp.pad(W_comb, ((0, 0), (0, Hp - H)))     # [Ecat, Hp]
    wh = matmul_rows(x_in.astype(jnp.bfloat16), W_comb.astype(jnp.bfloat16),
                     out_dtype=jnp.bfloat16)            # [B_pad*Nmax_p, Hp]
    wh = wh.reshape(B_pad, Nmax_p, Hp)

    a_alpha = _build_alpha_weight(params["a_src"], params["a_dst"])   # [H, 2h]
    a_alpha = jnp.pad(a_alpha, ((0, Hp - H), (0, 0))).astype(jnp.bfloat16)
    w_out = jnp.concatenate([params["w_sent"], params["w_feat"]], axis=1)  # [H,2]
    b_col = jnp.concatenate([params["b_sent"], params["b_feat"]], axis=0)  # [2,1]

    logits_t = gat_attention(f_num_pad, s_num_pad, wh, a_alpha,
                             w_out.astype(jnp.float32),
                             b_col.astype(jnp.float32),
                             heads=heads)               # [B_pad, 2, Nmax_p]

    # gather straight from the transposed (lane-dense) layout; no un-transpose
    sent_flat = logits_t[:, 0, :].reshape(B_pad * Nmax_p)
    feat_flat = logits_t[:, 1, :].reshape(B_pad * Nmax_p)
    logits_s = jnp.take(sent_flat, sent_pos)[:, None]   # [sum s_num, 1]
    logits_f = jnp.take(feat_flat, feat_pos)[:, None]   # [sum f_num, 1]
    return logits_s, logits_f


# ---------------------------------------------------------------------------
if __name__ == "__main__":
    key = jax.random.PRNGKey(0)
    keys = jax.random.split(key, 16)

    # synthetic "vocab" / config (args)
    user_num, item_num = 5, 6
    feature_num, train_sent_num = 10, 12
    user_embed_size = item_embed_size = 16
    feature_embed_size = sent_embed_size = 24
    hidden_size = 32
    head_num = 4

    def unif(k, shape, a=0.001):
        return jax.random.uniform(k, shape, jnp.float32, -a, a)

    params = {
        "head_num": head_num,
        # embedding tables (pretrained in the real model; synthetic here)
        "user_emb": unif(keys[0], (user_num, user_embed_size)),
        "item_emb": unif(keys[1], (item_num, item_embed_size)),
        "feat_emb": 0.1 * jax.random.normal(keys[2], (feature_num, feature_embed_size)),
        "sent_emb": 0.1 * jax.random.normal(keys[3], (train_sent_num, sent_embed_size)),
        # state projections (nn.Linear bias=False), stored as [in, out]
        "Wf": unif(keys[4], (feature_embed_size, hidden_size)),
        "Ws": unif(keys[5], (sent_embed_size, hidden_size)),
        "Wu": unif(keys[6], (user_embed_size, hidden_size)),
        "Wi": unif(keys[7], (item_embed_size, hidden_size)),
        # GAT parameters
        "Wgat": 0.05 * jax.random.normal(keys[8], (hidden_size, hidden_size)),
        "a_src": 0.05 * jax.random.normal(keys[9], (head_num, hidden_size // head_num)),
        "a_dst": 0.05 * jax.random.normal(keys[10], (head_num, hidden_size // head_num)),
        # output heads
        "w_sent": unif(keys[11], (hidden_size, 1)),
        "b_sent": jnp.zeros((1, 1), jnp.float32),
        "w_feat": unif(keys[12], (hidden_size, 1)),
        "b_feat": jnp.zeros((1, 1), jnp.float32),
    }

    # synthetic graph batch (B = 2 graphs)
    batch = {
        "f_num": np.array([3, 2]),
        "s_num": np.array([4, 3]),
        "fid": jnp.array([1, 4, 7, 2, 9], dtype=jnp.int32),         # sum(f_num) = 5
        "sid": jnp.array([0, 3, 5, 8, 2, 6, 11], dtype=jnp.int32),  # sum(s_num) = 7
        "userid": jnp.array([1, 3], dtype=jnp.int32),
        "itemid": jnp.array([0, 4], dtype=jnp.int32),
    }

    logits_s, logits_f = graphx_forward(params, batch)
    jax.block_until_ready((logits_s, logits_f))
    assert logits_s.shape == (int(batch["s_num"].sum()), 1)
    assert logits_f.shape == (int(batch["f_num"].sum()), 1)
    assert bool(jnp.all(jnp.isfinite(logits_s))) and bool(jnp.all(jnp.isfinite(logits_f)))
    print("KERNEL_OK")
</pallas_src>

<mosaic_0001>
module attributes {stable_mosaic.version = 11 : i64} {
  func.func @_matmul_kernel(%arg0: memref<256x80xbf16, #tpu.memory_space<vmem>>, %arg1: memref<80x128xbf16, #tpu.memory_space<vmem>>, %arg2: memref<256x128xbf16, #tpu.memory_space<vmem>>) attributes {dimension_semantics = [], scalar_prefetch = 0 : i64, scratch_operands = 0 : i64, tpu.core_type = #tpu.core_type<tc>} {
    %c0 = arith.constant 0 : index
    %c0_0 = arith.constant 0 : index
    %0 = vector.load %arg0[%c0, %c0_0] : memref<256x80xbf16, #tpu.memory_space<vmem>>, vector<256x80xbf16>
    %c0_1 = arith.constant 0 : index
    %c0_2 = arith.constant 0 : index
    %1 = vector.load %arg1[%c0_1, %c0_2] : memref<80x128xbf16, #tpu.memory_space<vmem>>, vector<80x128xbf16>
    %cst = arith.constant dense<0.000000e+00> : vector<256x128xf32>
    %2 = tpu.matmul %0, %1, %cst {dimension_numbers = #tpu.dot_dimension_numbers<[1], [0], [0], [1], [0, 0, 1, 1], [], []>} : vector<256x80xbf16>, vector<80x128xbf16>, vector<256x128xf32> -> vector<256x128xf32>
    %3 = arith.truncf %2 : vector<256x128xf32> to vector<256x128xbf16>
    %c0_3 = arith.constant 0 : index
    %c0_4 = arith.constant 0 : index
    %4 = vector.load %arg2[%c0_3, %c0_4] : memref<256x128xbf16, #tpu.memory_space<vmem>>, vector<256x128xbf16>
    tpu.vector_store %arg2[%c0_3, %c0_4], %3 {strides = array<i32>} : memref<256x128xbf16, #tpu.memory_space<vmem>>, vector<256x128xbf16>,
    return
  }
}

</mosaic_0001>

<llo_original>
// kernel: tpu_custom_call.1
$region0: #{tpu_custom_call.1}
  #allocation0 [shape = 'u32[]', space=smem, size = 0x4, offset = 0x4, fixed_abs, tag = 'smem constant byte address 0x4 - core index']
  #allocation1 [shape = 'u32[144,128]{1,0:T(1,128)}', space=vmem, size = 0x12000, scoped, tag = 'internal scratch']
  %s0 = inlined_call_operand.vmem [shape: bf16[256,80], index: 0, kind: input, shape index: {}]
  %s1 = inlined_call_operand.vmem [shape: bf16[80,128], index: 1, kind: input, shape index: {}]
  %s2 = inlined_call_operand.hbm [shape: bf16[256,128], index: 2, kind: output, shape index: {}]
  %s3 = sld [smem:[#allocation0]]
  $region18: #{tpu_custom_call.1} parent=0
    _
  %s5 = ssub.s32 1, %s3
  %s6 = scalar_select 0, %s5, %s3
  $region1: #{tpu_custom_call.1} parent=0
    #allocation2 [shape = 'u8[65536]{0}', space=vmem, size = 0x10000, scoped, tag = 'output window, operand 0, single buffered']
    #allocation3 [shape = 's32[1]{0}', space=sflag, size = 0x4, scoped, tag = 'scoped memory for tpu_custom_call.1']
    %7 = vsyncpa [#allocation3], 0
    // Predicated region
    $region2: #{tpu_custom_call.1} parent=1 // pred_check
      _
    $region3: #{tpu_custom_call.1} parent=1 // pred_check_branch
      %9 = sbr.rel (0) target = $region5
    $region4: #{tpu_custom_call.1} parent=1 // pred_region
      _
    $region5: #{tpu_custom_call.1} parent=1 // pred_fallthru
      _
    // Predicated region
    $region6: #{tpu_custom_call.1} parent=1 // pred_check
      _
    $region7: #{tpu_custom_call.1} parent=1 // pred_check_branch
      %11 = sbr.rel (0) target = $region9
    $region8: #{tpu_custom_call.1} parent=1 // pred_region
      _
    $region9: #{tpu_custom_call.1} parent=1 // pred_fallthru
      _
    %v13 = vld [vmem:[%s0] sm:$0xf]
    %v14 = vld [vmem:[%s0 + $0x4] sm:$0xf]
    %v15 = vld [vmem:[%s0 + $0x8] sm:$0xf]
    %v16 = vld [vmem:[%s0 + $0xc] sm:$0xf]
    %v17 = vld [vmem:[%s0 + $0x10] sm:$0xf]
    %v18 = vld [vmem:[%s0 + $0x14] sm:$0xf]
    %v19 = vld [vmem:[%s0 + $0x18] sm:$0xf]
    %v20 = vld [vmem:[%s0 + $0x1c] sm:$0xf]
    %v21 = vld [vmem:[%s0 + $0x20] sm:$0xf]
    %v22 = vld [vmem:[%s0 + $0x24] sm:$0xf]
    %v23 = vld [vmem:[%s0 + $0x28] sm:$0xf]
    %v24 = vld [vmem:[%s0 + $0x2c] sm:$0xf]
    %v25 = vld [vmem:[%s0 + $0x30] sm:$0xf]
    %v26 = vld [vmem:[%s0 + $0x34] sm:$0xf]
    %v27 = vld [vmem:[%s0 + $0x38] sm:$0xf]
    %v28 = vld [vmem:[%s0 + $0x3c] sm:$0xf]
    %v29 = vld [vmem:[%s0 + $0x40] sm:$0xf]
    %v30 = vld [vmem:[%s0 + $0x44] sm:$0xf]
    %v31 = vld [vmem:[%s0 + $0x48] sm:$0xf]
    %v32 = vld [vmem:[%s0 + $0x4c] sm:$0xf]
    %v33 = vld [vmem:[%s0 + $0x50] sm:$0xf]
    %v34 = vld [vmem:[%s0 + $0x54] sm:$0xf]
    %v35 = vld [vmem:[%s0 + $0x58] sm:$0xf]
    %v36 = vld [vmem:[%s0 + $0x5c] sm:$0xf]
    %v37 = vld [vmem:[%s0 + $0x60] sm:$0xf]
    %v38 = vld [vmem:[%s0 + $0x64] sm:$0xf]
    %v39 = vld [vmem:[%s0 + $0x68] sm:$0xf]
    %v40 = vld [vmem:[%s0 + $0x6c] sm:$0xf]
    %v41 = vld [vmem:[%s0 + $0x70] sm:$0xf]
    %v42 = vld [vmem:[%s0 + $0x74] sm:$0xf]
    %v43 = vld [vmem:[%s0 + $0x78] sm:$0xf]
    %v44 = vld [vmem:[%s0 + $0x7c] sm:$0xf]
    %v45 = vld [vmem:[%s1] sm:$0xf]
    %v46 = vld [vmem:[%s1 + $0x4] sm:$0xf]
    %v47 = vld [vmem:[%s1 + $0x8] sm:$0xf]
    %v48 = vld [vmem:[%s1 + $0xc] sm:$0xf]
    %v49 = vld [vmem:[%s1 + $0x10] sm:$0xf]
    %v50 = vld [vmem:[%s1 + $0x14] sm:$0xf]
    %v51 = vld [vmem:[%s1 + $0x18] sm:$0xf]
    %v52 = vld [vmem:[%s1 + $0x1c] sm:$0xf]
    %v53 = vld [vmem:[%s1 + $0x20] sm:$0xf]
    %v54 = vld [vmem:[%s1 + $0x24] sm:$0xf]
    %v87 = vunpack.c.l.b16 %v13
    %v88 = vunpack.c.l.b16 %v14
    %v89 = vunpack.c.l.b16 %v15
    %v90 = vunpack.c.l.b16 %v16
    %v91 = vunpack.c.l.b16 %v17
    %v92 = vunpack.c.l.b16 %v18
    %v93 = vunpack.c.l.b16 %v19
    %v94 = vunpack.c.l.b16 %v20
    %v95 = vunpack.c.l.b16 %v21
    %v96 = vunpack.c.l.b16 %v22
    %v97 = vunpack.c.l.b16 %v23
    %v98 = vunpack.c.l.b16 %v24
    %v99 = vunpack.c.l.b16 %v25
    %v100 = vunpack.c.l.b16 %v26
    %v101 = vunpack.c.l.b16 %v27
    %v102 = vunpack.c.l.b16 %v28
    %v103 = vunpack.c.l.b16 %v29
    %v104 = vunpack.c.l.b16 %v30
    %v105 = vunpack.c.l.b16 %v31
    %v106 = vunpack.c.l.b16 %v32
    %v107 = vunpack.c.l.b16 %v33
    %v108 = vunpack.c.l.b16 %v34
    %v109 = vunpack.c.l.b16 %v35
    %v110 = vunpack.c.l.b16 %v36
    %v111 = vunpack.c.l.b16 %v37
    %v112 = vunpack.c.l.b16 %v38
    %v113 = vunpack.c.l.b16 %v39
    %v114 = vunpack.c.l.b16 %v40
    %v115 = vunpack.c.l.b16 %v41
    %v116 = vunpack.c.l.b16 %v42
    %v117 = vunpack.c.l.b16 %v43
    %v118 = vunpack.c.l.b16 %v44
    %v119 = vpack.c.b16 %v88, %v87
    %v120 = vpack.c.b16 %v90, %v89
    %v121 = vpack.c.b16 %v92, %v91
    %v122 = vpack.c.b16 %v94, %v93
    %v123 = vpack.c.b16 %v96, %v95
    %v124 = vpack.c.b16 %v98, %v97
    %v125 = vpack.c.b16 %v100, %v99
    %v126 = vpack.c.b16 %v102, %v101
    %v127 = vpack.c.b16 %v104, %v103
    %v128 = vpack.c.b16 %v106, %v105
    %v129 = vpack.c.b16 %v108, %v107
    %v130 = vpack.c.b16 %v110, %v109
    %v131 = vpack.c.b16 %v112, %v111
    %v132 = vpack.c.b16 %v114, %v113
    %v133 = vpack.c.b16 %v116, %v115
    %v134 = vpack.c.b16 %v118, %v117
    %v145 = vunpack.c.l.b16 %v45
    %v146 = vunpack.c.l.b16 %v46
    %v147 = vunpack.c.l.b16 %v47
    %v148 = vunpack.c.l.b16 %v48
    %v149 = vunpack.c.l.b16 %v49
    %v150 = vunpack.c.l.b16 %v50
    %v151 = vunpack.c.l.b16 %v51
    %v152 = vunpack.c.l.b16 %v52
    %v153 = vunpack.c.l.b16 %v53
    %v154 = vunpack.c.l.b16 %v54
    %v155 = vpack.c.b16 %v146, %v145
    %v156 = vpack.c.b16 %v148, %v147
    %v157 = vpack.c.b16 %v150, %v149
    %v158 = vpack.c.b16 %v152, %v151
    %v159 = vpack.c.b16 %v154, %v153
    %vm165 = vcmask 654336
    %v167 = vsel %vm165, %v119, 0
    %v170 = vsel %vm165, %v120, 0
    %v173 = vsel %vm165, %v121, 0
    %v176 = vsel %vm165, %v122, 0
    %v179 = vsel %vm165, %v123, 0
    %v182 = vsel %vm165, %v124, 0
    %v185 = vsel %vm165, %v125, 0
    %v188 = vsel %vm165, %v126, 0
    %v191 = vsel %vm165, %v127, 0
    %v194 = vsel %vm165, %v128, 0
    %v197 = vsel %vm165, %v129, 0
    %v200 = vsel %vm165, %v130, 0
    %v203 = vsel %vm165, %v131, 0
    %v206 = vsel %vm165, %v132, 0
    %v209 = vsel %vm165, %v133, 0
    %v212 = vsel %vm165, %v134, 0
    %214 = vmatprep.subr.bf16.mxu0 0
    %215 = vmatpush1.bf16.msra.mxu0 %v155
    %216 = vmatprep.subr.bf16.mxu0 0
    %217 = vmatpush1.bf16.msra.mxu0 %v156
    %218 = vmatprep.subr.bf16.mxu0 0
    %219 = vmatpush1.bf16.msra.mxu0 %v157
    %220 = vmatprep.subr.bf16.mxu0 0
    %221 = vmatpush1.bf16.msra.mxu0 %v158
    %222 = vmatprep.subr.bf16.mxu0 0
    %223 = vmatpush1.bf16.msra.mxu0 %v159
    %224 = vmatprep.subr.bf16.mxu0 0
    %225 = vmatpush1.bf16.msra.mxu0 0
    %226 = vmatprep.subr.bf16.mxu0 0
    %227 = vmatpush1.bf16.msra.mxu0 0
    %228 = vmatprep.subr.bf16.mxu0 0
    %229 = vmatpush1.bf16.msra.mxu0 0
    %230 = vmatprep.subr.bf16.mxu0 0
    %231 = vmatpush1.bf16.msra.mxu0 0
    %232 = vmatprep.subr.bf16.mxu0 0
    %233 = vmatpush1.bf16.msra.mxu0 0
    %234 = vmatprep.subr.bf16.mxu0 0
    %235 = vmatpush1.bf16.msra.mxu0 0
    %236 = vmatprep.subr.bf16.mxu0 0
    %237 = vmatpush1.bf16.msra.mxu0 0
    %238 = vmatprep.subr.bf16.mxu0 0
    %239 = vmatpush1.bf16.msra.mxu0 0
    %240 = vmatprep.subr.bf16.mxu0 0
    %241 = vmatpush1.bf16.msra.mxu0 0
    %242 = vmatprep.subr.bf16.mxu0 0
    %243 = vmatpush1.bf16.msra.mxu0 0
    %244 = vmatprep.subr.bf16.mxu0 0
    %245 = vmatpush1.bf16.msra.mxu0 0
    %246 = vmatprep.mubr.bf16.mxu0 0
    %247 = vmatmul.mubr.bf16.gmra.mrb[0].mxu0 %v167
    %v248 = vpop.f32.mrb[0].mxu0
    %v249 = vadd.f32 0.0, %v248
    %v250 = vpop.f32.mrb[0].mxu0
    %v251 = vpop.f32.mrb[0].mxu0
    %v252 = vadd.f32 0.0, %v251
    %v253 = vpop.f32.mrb[0].mxu0
    %254 = vmatprep.mubr.bf16.mxu0 0
    %255 = vmatmul.mubr.bf16.gmra.mrb[0].mxu0 %v170
    %v256 = vpop.f32.mrb[0].mxu0
    %v257 = vadd.f32 0.0, %v256
    %v258 = vpop.f32.mrb[0].mxu0
    %v259 = vpop.f32.mrb[0].mxu0
    %v260 = vadd.f32 0.0, %v259
    %v261 = vpop.f32.mrb[0].mxu0
    %262 = vmatprep.mubr.bf16.mxu0 0
    %263 = vmatmul.mubr.bf16.gmra.mrb[0].mxu0 %v173
    %v264 = vpop.f32.mrb[0].mxu0
    %v265 = vadd.f32 0.0, %v264
    %v266 = vpop.f32.mrb[0].mxu0
    %v267 = vpop.f32.mrb[0].mxu0
    %v268 = vadd.f32 0.0, %v267
    %v269 = vpop.f32.mrb[0].mxu0
    %270 = vmatprep.mubr.bf16.mxu0 0
    %271 = vmatmul.mubr.bf16.gmra.mrb[0].mxu0 %v176
    %v272 = vpop.f32.mrb[0].mxu0
    %v273 = vadd.f32 0.0, %v272
    %v274 = vpop.f32.mrb[0].mxu0
    %v275 = vpop.f32.mrb[0].mxu0
    %v276 = vadd.f32 0.0, %v275
    %v277 = vpop.f32.mrb[0].mxu0
    %278 = vmatprep.mubr.bf16.mxu0 0
    %279 = vmatmul.mubr.bf16.gmra.mrb[0].mxu0 %v179
    %v280 = vpop.f32.mrb[0].mxu0
    %v281 = vadd.f32 0.0, %v280
    %v282 = vpop.f32.mrb[0].mxu0
    %v283 = vpop.f32.mrb[0].mxu0
    %v284 = vadd.f32 0.0, %v283
    %v285 = vpop.f32.mrb[0].mxu0
    %286 = vmatprep.mubr.bf16.mxu0 0
    %287 = vmatmul.mubr.bf16.gmra.mrb[0].mxu0 %v182
    %v288 = vpop.f32.mrb[0].mxu0
    %v289 = vadd.f32 0.0, %v288
    %v290 = vpop.f32.mrb[0].mxu0
    %v291 = vpop.f32.mrb[0].mxu0
    %v292 = vadd.f32 0.0, %v291
    %v293 = vpop.f32.mrb[0].mxu0
    %294 = vmatprep.mubr.bf16.mxu0 0
    %295 = vmatmul.mubr.bf16.gmra.mrb[0].mxu0 %v185
    %v296 = vpop.f32.mrb[0].mxu0
    %v297 = vadd.f32 0.0, %v296
    %v298 = vpop.f32.mrb[0].mxu0
    %v299 = vpop.f32.mrb[0].mxu0
    %v300 = vadd.f32 0.0, %v299
    %v301 = vpop.f32.mrb[0].mxu0
    %302 = vmatprep.mubr.bf16.mxu0 0
    %303 = vmatmul.mubr.bf16.gmra.mrb[0].mxu0 %v188
    %v304 = vpop.f32.mrb[0].mxu0
    %v305 = vadd.f32 0.0, %v304
    %v306 = vpop.f32.mrb[0].mxu0
    %v307 = vpop.f32.mrb[0].mxu0
    %v308 = vadd.f32 0.0, %v307
    %v309 = vpop.f32.mrb[0].mxu0
    %310 = vmatprep.mubr.bf16.mxu0 0
    %311 = vmatmul.mubr.bf16.gmra.mrb[0].mxu0 %v191
    %v312 = vpop.f32.mrb[0].mxu0
    %v313 = vadd.f32 0.0, %v312
    %v314 = vpop.f32.mrb[0].mxu0
    %v315 = vpop.f32.mrb[0].mxu0
    %v316 = vadd.f32 0.0, %v315
    %v317 = vpop.f32.mrb[0].mxu0
    %318 = vmatprep.mubr.bf16.mxu0 0
    %319 = vmatmul.mubr.bf16.gmra.mrb[0].mxu0 %v194
    %v320 = vpop.f32.mrb[0].mxu0
    %v321 = vadd.f32 0.0, %v320
    %v322 = vpop.f32.mrb[0].mxu0
    %v323 = vpop.f32.mrb[0].mxu0
    %v324 = vadd.f32 0.0, %v323
    %v325 = vpop.f32.mrb[0].mxu0
    %326 = vmatprep.mubr.bf16.mxu0 0
    %327 = vmatmul.mubr.bf16.gmra.mrb[0].mxu0 %v197
    %v328 = vpop.f32.mrb[0].mxu0
    %v329 = vadd.f32 0.0, %v328
    %v330 = vpop.f32.mrb[0].mxu0
    %v331 = vpop.f32.mrb[0].mxu0
    %v332 = vadd.f32 0.0, %v331
    %v333 = vpop.f32.mrb[0].mxu0
    %334 = vmatprep.mubr.bf16.mxu0 0
    %335 = vmatmul.mubr.bf16.gmra.mrb[0].mxu0 %v200
    %v336 = vpop.f32.mrb[0].mxu0
    %v337 = vadd.f32 0.0, %v336
    %v338 = vpop.f32.mrb[0].mxu0
    %v339 = vpop.f32.mrb[0].mxu0
    %v340 = vadd.f32 0.0, %v339
    %v341 = vpop.f32.mrb[0].mxu0
    %342 = vmatprep.mubr.bf16.mxu0 0
    %343 = vmatmul.mubr.bf16.gmra.mrb[0].mxu0 %v203
    %v344 = vpop.f32.mrb[0].mxu0
    %v345 = vadd.f32 0.0, %v344
    %v346 = vpop.f32.mrb[0].mxu0
    %v347 = vpop.f32.mrb[0].mxu0
    %v348 = vadd.f32 0.0, %v347
    %v349 = vpop.f32.mrb[0].mxu0
    %350 = vmatprep.mubr.bf16.mxu0 0
    %351 = vmatmul.mubr.bf16.gmra.mrb[0].mxu0 %v206
    %v352 = vpop.f32.mrb[0].mxu0
    %v353 = vadd.f32 0.0, %v352
    %v354 = vpop.f32.mrb[0].mxu0
    %v355 = vpop.f32.mrb[0].mxu0
    %v356 = vadd.f32 0.0, %v355
    %v357 = vpop.f32.mrb[0].mxu0
    %358 = vmatprep.mubr.bf16.mxu0 0
    %359 = vmatmul.mubr.bf16.gmra.mrb[0].mxu0 %v209
    %v360 = vpop.f32.mrb[0].mxu0
    %v361 = vadd.f32 0.0, %v360
    %v362 = vpop.f32.mrb[0].mxu0
    %v363 = vpop.f32.mrb[0].mxu0
    %v364 = vadd.f32 0.0, %v363
    %v365 = vpop.f32.mrb[0].mxu0
    %366 = vmatprep.mubr.bf16.mxu0 0
    %367 = vmatmul.mubr.bf16.gmra.mrb[0].mxu0 %v212
    %v368 = vpop.f32.mrb[0].mxu0
    %v369 = vadd.f32 0.0, %v368
    %v370 = vpop.f32.mrb[0].mxu0
    %v371 = vpop.f32.mrb[0].mxu0
    %v372 = vadd.f32 0.0, %v371
    %v373 = vpop.f32.mrb[0].mxu0
    %374 = vdwg.mxu0
    %v375 = vpack.c.bf16 %v252, %v249
    %v376 = vpack.c.bf16 %v260, %v257
    %v377 = vpack.c.bf16 %v268, %v265
    %v378 = vpack.c.bf16 %v276, %v273
    %v379 = vpack.c.bf16 %v284, %v281
    %v380 = vpack.c.bf16 %v292, %v289
    %v381 = vpack.c.bf16 %v300, %v297
    %v382 = vpack.c.bf16 %v308, %v305
    %v383 = vpack.c.bf16 %v316, %v313
    %v384 = vpack.c.bf16 %v324, %v321
    %v385 = vpack.c.bf16 %v332, %v329
    %v386 = vpack.c.bf16 %v340, %v337
    %v387 = vpack.c.bf16 %v348, %v345
    %v388 = vpack.c.bf16 %v356, %v353
    %v389 = vpack.c.bf16 %v364, %v361
    %v390 = vpack.c.bf16 %v372, %v369
    %v407 = vunpack.c.l.b16 %v375
    %v408 = vunpack.c.h.b16 %v375
    %v409 = vunpack.c.l.b16 %v376
    %v410 = vunpack.c.h.b16 %v376
    %v411 = vunpack.c.l.b16 %v377
    %v412 = vunpack.c.h.b16 %v377
    %v413 = vunpack.c.l.b16 %v378
    %v414 = vunpack.c.h.b16 %v378
    %v415 = vunpack.c.l.b16 %v379
    %v416 = vunpack.c.h.b16 %v379
    %v417 = vunpack.c.l.b16 %v380
    %v418 = vunpack.c.h.b16 %v380
    %v419 = vunpack.c.l.b16 %v381
    %v420 = vunpack.c.h.b16 %v381
    %v421 = vunpack.c.l.b16 %v382
    %v422 = vunpack.c.h.b16 %v382
    %v423 = vunpack.c.l.b16 %v383
    %v424 = vunpack.c.h.b16 %v383
    %v425 = vunpack.c.l.b16 %v384
    %v426 = vunpack.c.h.b16 %v384
    %v427 = vunpack.c.l.b16 %v385
    %v428 = vunpack.c.h.b16 %v385
    %v429 = vunpack.c.l.b16 %v386
    %v430 = vunpack.c.h.b16 %v386
    %v431 = vunpack.c.l.b16 %v387
    %v432 = vunpack.c.h.b16 %v387
    %v433 = vunpack.c.l.b16 %v388
    %v434 = vunpack.c.h.b16 %v388
    %v435 = vunpack.c.l.b16 %v389
    %v436 = vunpack.c.h.b16 %v389
    %v437 = vunpack.c.l.b16 %v390
    %v438 = vunpack.c.h.b16 %v390
    %v439 = vpack.c.b16 %v407, %v407
    %v440 = vpack.c.b16 %v408, %v408
    %v441 = vpack.c.b16 %v409, %v409
    %v442 = vpack.c.b16 %v410, %v410
    %v443 = vpack.c.b16 %v411, %v411
    %v444 = vpack.c.b16 %v412, %v412
    %v445 = vpack.c.b16 %v413, %v413
    %v446 = vpack.c.b16 %v414, %v414
    %v447 = vpack.c.b16 %v415, %v415
    %v448 = vpack.c.b16 %v416, %v416
    %v449 = vpack.c.b16 %v417, %v417
    %v450 = vpack.c.b16 %v418, %v418
    %v451 = vpack.c.b16 %v419, %v419
    %v452 = vpack.c.b16 %v420, %v420
    %v453 = vpack.c.b16 %v421, %v421
    %v454 = vpack.c.b16 %v422, %v422
    %v455 = vpack.c.b16 %v423, %v423
    %v456 = vpack.c.b16 %v424, %v424
    %v457 = vpack.c.b16 %v425, %v425
    %v458 = vpack.c.b16 %v426, %v426
    %v459 = vpack.c.b16 %v427, %v427
    %v460 = vpack.c.b16 %v428, %v428
    %v461 = vpack.c.b16 %v429, %v429
    %v462 = vpack.c.b16 %v430, %v430
    %v463 = vpack.c.b16 %v431, %v431
    %v464 = vpack.c.b16 %v432, %v432
    %v465 = vpack.c.b16 %v433, %v433
    %v466 = vpack.c.b16 %v434, %v434
    %v467 = vpack.c.b16 %v435, %v435
    %v468 = vpack.c.b16 %v436, %v436
    %v469 = vpack.c.b16 %v437, %v437
    %v470 = vpack.c.b16 %v438, %v438
    %503 = vst [vmem:[#allocation2] sm:$0xf] %v439
    %504 = vst [vmem:[#allocation2 + $0x4] sm:$0xf] %v440
    %505 = vst [vmem:[#allocation2 + $0x8] sm:$0xf] %v441
    %506 = vst [vmem:[#allocation2 + $0xc] sm:$0xf] %v442
    %507 = vst [vmem:[#allocation2 + $0x10] sm:$0xf] %v443
    %508 = vst [vmem:[#allocation2 + $0x14] sm:$0xf] %v444
    %509 = vst [vmem:[#allocation2 + $0x18] sm:$0xf] %v445
    %510 = vst [vmem:[#allocation2 + $0x1c] sm:$0xf] %v446
    %511 = vst [vmem:[#allocation2 + $0x20] sm:$0xf] %v447
    %512 = vst [vmem:[#allocation2 + $0x24] sm:$0xf] %v448
    %513 = vst [vmem:[#allocation2 + $0x28] sm:$0xf] %v449
    %514 = vst [vmem:[#allocation2 + $0x2c] sm:$0xf] %v450
    %515 = vst [vmem:[#allocation2 + $0x30] sm:$0xf] %v451
    %516 = vst [vmem:[#allocation2 + $0x34] sm:$0xf] %v452
    %517 = vst [vmem:[#allocation2 + $0x38] sm:$0xf] %v453
    %518 = vst [vmem:[#allocation2 + $0x3c] sm:$0xf] %v454
    %519 = vst [vmem:[#allocation2 + $0x40] sm:$0xf] %v455
    %520 = vst [vmem:[#allocation2 + $0x44] sm:$0xf] %v456
    %521 = vst [vmem:[#allocation2 + $0x48] sm:$0xf] %v457
    %522 = vst [vmem:[#allocation2 + $0x4c] sm:$0xf] %v458
    %523 = vst [vmem:[#allocation2 + $0x50] sm:$0xf] %v459
    %524 = vst [vmem:[#allocation2 + $0x54] sm:$0xf] %v460
    %525 = vst [vmem:[#allocation2 + $0x58] sm:$0xf] %v461
    %526 = vst [vmem:[#allocation2 + $0x5c] sm:$0xf] %v462
    %527 = vst [vmem:[#allocation2 + $0x60] sm:$0xf] %v463
    %528 = vst [vmem:[#allocation2 + $0x64] sm:$0xf] %v464
    %529 = vst [vmem:[#allocation2 + $0x68] sm:$0xf] %v465
    %530 = vst [vmem:[#allocation2 + $0x6c] sm:$0xf] %v466
    %531 = vst [vmem:[#allocation2 + $0x70] sm:$0xf] %v467
    %532 = vst [vmem:[#allocation2 + $0x74] sm:$0xf] %v468
    %533 = vst [vmem:[#allocation2 + $0x78] sm:$0xf] %v469
    %534 = vst [vmem:[#allocation2 + $0x7c] sm:$0xf] %v470
    // Predicated region
    $region10: #{tpu_custom_call.1} parent=1 // pred_check
      _
    $region11: #{tpu_custom_call.1} parent=1 // pred_check_branch
      %536 = sbr.rel (0) target = $region13
    $region12: #{tpu_custom_call.1} parent=1 // pred_region
      %s538 = ssub.s32 2048, 2048
      %539 = vsyncadd [#allocation3], %s538
      %s540 = sshll.u32 [#allocation2], 4
      %s541 = int_to_ptr.vmem [resolvable:$true] %s540
      %546 = dma.vmem_to_hbm [thread:$0]  %s541, 2048, %s2, [#allocation3], 64, 64, 4
    $region13: #{tpu_custom_call.1} parent=1 // pred_fallthru
      _
    // Predicated region
    $region14: #{tpu_custom_call.1} parent=1 // pred_check
      _
    $region15: #{tpu_custom_call.1} parent=1 // pred_check_branch
      %548 = sbr.rel (0) target = $region17
    $region16: #{tpu_custom_call.1} parent=1 // pred_region
      %549 = dma.done [#allocation3], 2048
    $region17: #{tpu_custom_call.1} parent=1 // pred_fallthru
      _
    %550 = vsyncpa [#allocation3], 1

</llo_original>
